<compile_context>
chip_gen: v7x
topology: tpu7x:2x2x1
jax: 0.10.0
libtpu: 0.0.40
codegen_flags: <defaults>
</compile_context>

<pallas_src>
from functools import partial

import jax
import jax.numpy as jnp
from jax.experimental import pallas as pl
from jax.experimental.pallas import tpu as pltpu


_MAX_TILE_B = 512  # sweep 512-1024; 512 keeps the per-tile working set well inside v5e's
                   # 16 MB default scoped VMEM with no vmem_limit override.


def _round_up(n, m):
    return ((n + m - 1) // m) * m


def _make_kernel(A, Ap, H):
    """Build the kernel with static action counts (A actual, Ap padded to multiple of 8)."""

    def kernel(x_ref, w1_ref, b12_ref, w2_ref, w3t_ref, b3t_ref, out_ref):
        x = x_ref[...].astype(jnp.bfloat16)                      # (tile_b, S)

        # ---- fused layer 1 (shared input): relu(x @ [q1_w | i1_w] + [q1_b | i1_b]) ----
        h1 = jnp.dot(x, w1_ref[...], preferred_element_type=jnp.float32) + b12_ref[0:1, :]
        h1 = jnp.maximum(h1, 0.0).astype(jnp.bfloat16)           # (tile_b, 2H)

        # ---- layer 2 (per-branch dots on 128-aligned halves of h1) ----
        q2 = jnp.dot(h1[:, :H], w2_ref[0], preferred_element_type=jnp.float32) + b12_ref[1:2, :H]
        q2 = jnp.maximum(q2, 0.0).astype(jnp.bfloat16)           # (tile_b, H)
        i2 = jnp.dot(h1[:, H:], w2_ref[1], preferred_element_type=jnp.float32) + b12_ref[1:2, H:]
        i2 = jnp.maximum(i2, 0.0).astype(jnp.bfloat16)           # (tile_b, H)

        # ---- layer 3, transposed orientation (action on sublanes, batch on lanes) ----
        # Contract the hidden dim of both operands (A.B^T, MXU-native) so no data transpose
        # is needed and the output slab is lane-dense.
        dn = (((1,), (1,)), ((), ()))
        q3t = jax.lax.dot_general(w3t_ref[0], q2, dn,
                                  preferred_element_type=jnp.float32) + b3t_ref[0:Ap]
        i3t = jax.lax.dot_general(w3t_ref[1], i2, dn,
                                  preferred_element_type=jnp.float32) + b3t_ref[Ap:2 * Ap]
        i_out = jnp.maximum(i3t, 0.0)                            # (Ap, tile_b)

        # ---- log_softmax over the action axis (now sublanes), numerically stable, f32 ----
        if Ap == A:
            i_sm = i_out
        else:  # exclude zero-padded action rows from the softmax
            row = jax.lax.broadcasted_iota(jnp.int32, i_out.shape, 0)
            i_sm = jnp.where(row < A, i_out, -jnp.inf)
        m = jnp.max(i_sm, axis=0, keepdims=True)
        shifted = i_sm - m
        lse = jnp.log(jnp.sum(jnp.exp(shifted), axis=0, keepdims=True))
        logp = shifted - lse

        # ---- packed, lane-dense output slab: [q3 ; log_softmax(i) ; i] along sublanes ----
        out_ref[0:Ap, :] = q3t
        out_ref[Ap:2 * Ap, :] = logp
        out_ref[2 * Ap:3 * Ap, :] = i_out

    return kernel


def prepare_fused_params(params):
    """One-time host-side weight prep: bf16 cast + packing (6 kernel operands incl. x).

    w1  : (S, 2H)  = [q1_w | i1_w]                      bf16
    b12 : (2, 2H)  = [[q1_b | i1_b], [q2_b | i2_b]]     f32
    w2s : (2, H, H) stacked (q2_w, i2_w)                bf16
    w3t : (2, Ap, H) stacked transposed (q3_w^T, i3_w^T), zero-padded to Ap  bf16
    b3t : (2*Ap, 1)  [q3_b^T ; i3_b^T], zero-padded     f32
    """
    bf16, f32 = jnp.bfloat16, jnp.float32
    A = params["q3_w"].shape[1]
    Ap = _round_up(A, 8)
    pad = Ap - A

    w1 = jnp.concatenate([params["q1_w"], params["i1_w"]], axis=1).astype(bf16)
    b12 = jnp.stack([
        jnp.concatenate([params["q1_b"][0], params["i1_b"][0]]),
        jnp.concatenate([params["q2_b"][0], params["i2_b"][0]]),
    ]).astype(f32)
    w2s = jnp.stack([params["q2_w"], params["i2_w"]]).astype(bf16)

    def w3_t(w):                       # (H, A) -> (Ap, H)
        wt = w.T
        return jnp.pad(wt, ((0, pad), (0, 0))) if pad else wt

    def b3_t(b):                       # (1, A) -> (Ap, 1)
        bt = b.reshape(-1, 1)
        return jnp.pad(bt, ((0, pad), (0, 0))) if pad else bt

    w3t = jnp.stack([w3_t(params["q3_w"]), w3_t(params["i3_w"])]).astype(bf16)
    b3t = jnp.concatenate([b3_t(params["q3_b"]), b3_t(params["i3_b"])], axis=0).astype(f32)

    return (w1, b12, w2s, w3t, b3t)


@partial(jax.jit, static_argnums=(2,))
def fc_q_forward(x, fused_params, num_actions):
    w1, b12, w2s, w3t, b3t = fused_params
    B, S = x.shape
    H = w2s.shape[-1]
    Ap = w3t.shape[1]
    A = num_actions

    # ---- batch tiling ----
    if B <= 128:
        tile_b = _round_up(B, 8)                         # single tile (block == full array)
    else:
        # >= 2 grid points so both v7x TensorCores engage on the "parallel" axis;
        # tile_b must be a multiple of 128 for the lane-dense (3*Ap, tile_b) output block.
        tile_b = min(_MAX_TILE_B, _round_up(pl.cdiv(B, 2), 128))
    b_pad = _round_up(B, tile_b)
    if b_pad != B:
        x = jnp.pad(x, ((0, b_pad - B), (0, 0)))
    grid = (b_pad // tile_b,)

    def resident(a):
        # Whole-array block, constant index_map: DMA'd once, resident across batch tiles.
        return pl.BlockSpec(a.shape, lambda t, n=a.ndim: (0,) * n)

    in_specs = [pl.BlockSpec((tile_b, S), lambda t: (t, 0))]
    in_specs += [resident(a) for a in (w1, b12, w2s, w3t, b3t)]

    out = pl.pallas_call(
        _make_kernel(A, Ap, H),
        grid=grid,
        in_specs=in_specs,
        out_specs=pl.BlockSpec((3 * Ap, tile_b), lambda t: (0, t)),
        out_shape=jax.ShapeDtypeStruct((3 * Ap, b_pad), jnp.float32),
        compiler_params=pltpu.CompilerParams(dimension_semantics=("parallel",)),
    )(x, w1, b12, w2s, w3t, b3t)

    out = out[:, :B]
    q_out = out[0:A].T
    logp = out[Ap:Ap + A].T
    i_out = out[2 * Ap:2 * Ap + A].T
    return q_out, logp, i_out


def init_params(key, state_dim, num_actions, hidden=256):
    """Deterministic init mimicking PyTorch Linear default (uniform +-1/sqrt(fan_in)).
    Weights stored as (in_features, out_features) so y = x @ W + b."""
    def linear(k, fan_in, fan_out):
        kw, kb = jax.random.split(k)
        bound = 1.0 / jnp.sqrt(fan_in)
        w = jax.random.uniform(kw, (fan_in, fan_out), jnp.float32, -bound, bound)
        b = jax.random.uniform(kb, (1, fan_out), jnp.float32, -bound, bound)
        return w, b

    keys = jax.random.split(key, 6)
    p = {}
    p["q1_w"], p["q1_b"] = linear(keys[0], state_dim, hidden)
    p["q2_w"], p["q2_b"] = linear(keys[1], hidden, hidden)
    p["q3_w"], p["q3_b"] = linear(keys[2], hidden, num_actions)
    p["i1_w"], p["i1_b"] = linear(keys[3], state_dim, hidden)
    p["i2_w"], p["i2_b"] = linear(keys[4], hidden, hidden)
    p["i3_w"], p["i3_b"] = linear(keys[5], hidden, num_actions)
    return p


def fc_q_reference(x, p):
    """Pure-JAX reference with the same bf16 weight/activation quantization as the kernel."""
    bf16 = jnp.bfloat16

    def dense(a, w, b):
        return jnp.dot(a.astype(bf16), w.astype(bf16),
                       preferred_element_type=jnp.float32) + b

    q = jax.nn.relu(dense(x, p["q1_w"], p["q1_b"]))
    q = jax.nn.relu(dense(q, p["q2_w"], p["q2_b"]))
    q_out = dense(q, p["q3_w"], p["q3_b"])

    i = jax.nn.relu(dense(x, p["i1_w"], p["i1_b"]))
    i = jax.nn.relu(dense(i, p["i2_w"], p["i2_b"]))
    i = jax.nn.relu(dense(i, p["i3_w"], p["i3_b"]))
    return q_out, jax.nn.log_softmax(i, axis=1), i


if __name__ == "__main__":
    state_dim = 32
    num_actions = 8

    key = jax.random.PRNGKey(0)
    k_p, k_x_small, k_x_big = jax.random.split(key, 3)
    params = init_params(k_p, state_dim, num_actions)
    fused = prepare_fused_params(params)

    # Small batch (single tile, masked lanes) and a larger batch exercising the
    # multi-tile grid (>=2 parallel tiles), padding, and lane-dense output path.
    for batch, kx in ((4, k_x_small), (300, k_x_big)):
        x = jax.random.normal(kx, (batch, state_dim), jnp.float32)

        q_out, logp_out, i_out = fc_q_forward(x, fused, num_actions)
        jax.block_until_ready((q_out, logp_out, i_out))

        q_ref, logp_ref, i_ref = fc_q_reference(x, params)
        assert q_out.shape == (batch, num_actions)
        assert logp_out.shape == (batch, num_actions)
        assert i_out.shape == (batch, num_actions)
        assert jnp.allclose(q_out, q_ref, atol=1e-3, rtol=1e-3)
        assert jnp.allclose(logp_out, logp_ref, atol=1e-3, rtol=1e-3)
        assert jnp.allclose(i_out, i_ref, atol=1e-3, rtol=1e-3)

    print("KERNEL_OK")
</pallas_src>

<mosaic_0001>
module attributes {stable_mosaic.version = 11 : i64} {
  func.func @kernel(%arg0: i32, %arg1: memref<8x32xf32, #tpu.memory_space<vmem>>, %arg2: memref<32x512xbf16, #tpu.memory_space<vmem>>, %arg3: memref<2x512xf32, #tpu.memory_space<vmem>>, %arg4: memref<2x256x256xbf16, #tpu.memory_space<vmem>>, %arg5: memref<2x8x256xbf16, #tpu.memory_space<vmem>>, %arg6: memref<16x1xf32, #tpu.memory_space<vmem>>, %arg7: memref<24x8xf32, #tpu.memory_space<vmem>>) attributes {dimension_semantics = [#tpu.dimension_semantics<parallel>], iteration_bounds = array<i64: 1>, scalar_prefetch = 0 : i64, scratch_operands = 0 : i64, tpu.core_type = #tpu.core_type<tc>, window_params = [{transform_indices = @transform_0, window_bounds = array<i64: 8, 32>}, {pipeline_mode = #tpu.pipeline_mode<synchronous>, transform_indices = @transform_1, window_bounds = array<i64: 32, 512>}, {pipeline_mode = #tpu.pipeline_mode<synchronous>, transform_indices = @transform_2, window_bounds = array<i64: 2, 512>}, {pipeline_mode = #tpu.pipeline_mode<synchronous>, transform_indices = @transform_3, window_bounds = array<i64: 2, 256, 256>}, {pipeline_mode = #tpu.pipeline_mode<synchronous>, transform_indices = @transform_4, window_bounds = array<i64: 2, 8, 256>}, {pipeline_mode = #tpu.pipeline_mode<synchronous>, transform_indices = @transform_5, window_bounds = array<i64: 16, 1>}, {transform_indices = @transform_6, window_bounds = array<i64: 24, 8>}]} {
    %c0 = arith.constant 0 : index
    %c0_0 = arith.constant 0 : index
    %0 = vector.load %arg1[%c0, %c0_0] : memref<8x32xf32, #tpu.memory_space<vmem>>, vector<8x32xf32>
    %1 = arith.truncf %0 : vector<8x32xf32> to vector<8x32xbf16>
    %c0_1 = arith.constant 0 : index
    %c0_2 = arith.constant 0 : index
    %2 = vector.load %arg2[%c0_1, %c0_2] : memref<32x512xbf16, #tpu.memory_space<vmem>>, vector<32x512xbf16>
    %cst = arith.constant dense<0.000000e+00> : vector<8x512xf32>
    %3 = tpu.matmul %1, %2, %cst {dimension_numbers = #tpu.dot_dimension_numbers<[1], [0], [0], [1], [0, 0, 1, 1], [], []>} : vector<8x32xbf16>, vector<32x512xbf16>, vector<8x512xf32> -> vector<8x512xf32>
    %c0_3 = arith.constant 0 : index
    %c0_4 = arith.constant 0 : index
    %4 = vector.load %arg3[%c0_3, %c0_4] : memref<2x512xf32, #tpu.memory_space<vmem>>, vector<1x512xf32>
    %5 = vector.broadcast %4 : vector<1x512xf32> to vector<8x512xf32>
    %6 = arith.addf %3, %5 : vector<8x512xf32>
    %cst_5 = arith.constant 0.000000e+00 : f32
    %7 = vector.broadcast %cst_5 : f32 to vector<8x512xf32>
    %8 = arith.maximumf %6, %7 : vector<8x512xf32>
    %9 = arith.truncf %8 : vector<8x512xf32> to vector<8x512xbf16>
    %10 = vector.extract_strided_slice %9 {offsets = [0, 0], sizes = [8, 256], strides = [1, 1]} : vector<8x512xbf16> to vector<8x256xbf16>
    %c0_6 = arith.constant 0 : index
    %c0_7 = arith.constant 0 : index
    %c0_8 = arith.constant 0 : index
    %11 = vector.load %arg4[%c0_6, %c0_7, %c0_8] : memref<2x256x256xbf16, #tpu.memory_space<vmem>>, vector<1x256x256xbf16>
    %12 = vector.shape_cast %11 : vector<1x256x256xbf16> to vector<256x256xbf16>
    %cst_9 = arith.constant dense<0.000000e+00> : vector<8x256xf32>
    %13 = tpu.matmul %10, %12, %cst_9 {dimension_numbers = #tpu.dot_dimension_numbers<[1], [0], [0], [1], [0, 0, 1, 1], [], []>} : vector<8x256xbf16>, vector<256x256xbf16>, vector<8x256xf32> -> vector<8x256xf32>
    %c1 = arith.constant 1 : index
    %c0_10 = arith.constant 0 : index
    %14 = vector.load %arg3[%c1, %c0_10] : memref<2x512xf32, #tpu.memory_space<vmem>>, vector<1x256xf32>
    %15 = vector.broadcast %14 : vector<1x256xf32> to vector<8x256xf32>
    %16 = arith.addf %13, %15 : vector<8x256xf32>
    %cst_11 = arith.constant 0.000000e+00 : f32
    %17 = vector.broadcast %cst_11 : f32 to vector<8x256xf32>
    %18 = arith.maximumf %16, %17 : vector<8x256xf32>
    %19 = arith.truncf %18 : vector<8x256xf32> to vector<8x256xbf16>
    %20 = vector.extract_strided_slice %9 {offsets = [0, 256], sizes = [8, 256], strides = [1, 1]} : vector<8x512xbf16> to vector<8x256xbf16>
    %c1_12 = arith.constant 1 : index
    %c0_13 = arith.constant 0 : index
    %c0_14 = arith.constant 0 : index
    %21 = vector.load %arg4[%c1_12, %c0_13, %c0_14] : memref<2x256x256xbf16, #tpu.memory_space<vmem>>, vector<1x256x256xbf16>
    %22 = vector.shape_cast %21 : vector<1x256x256xbf16> to vector<256x256xbf16>
    %cst_15 = arith.constant dense<0.000000e+00> : vector<8x256xf32>
    %23 = tpu.matmul %20, %22, %cst_15 {dimension_numbers = #tpu.dot_dimension_numbers<[1], [0], [0], [1], [0, 0, 1, 1], [], []>} : vector<8x256xbf16>, vector<256x256xbf16>, vector<8x256xf32> -> vector<8x256xf32>
    %c1_16 = arith.constant 1 : index
    %c256 = arith.constant 256 : index
    %24 = vector.load %arg3[%c1_16, %c256] : memref<2x512xf32, #tpu.memory_space<vmem>>, vector<1x256xf32>
    %25 = vector.broadcast %24 : vector<1x256xf32> to vector<8x256xf32>
    %26 = arith.addf %23, %25 : vector<8x256xf32>
    %cst_17 = arith.constant 0.000000e+00 : f32
    %27 = vector.broadcast %cst_17 : f32 to vector<8x256xf32>
    %28 = arith.maximumf %26, %27 : vector<8x256xf32>
    %29 = arith.truncf %28 : vector<8x256xf32> to vector<8x256xbf16>
    %c0_18 = arith.constant 0 : index
    %c0_19 = arith.constant 0 : index
    %c0_20 = arith.constant 0 : index
    %30 = vector.load %arg5[%c0_18, %c0_19, %c0_20] : memref<2x8x256xbf16, #tpu.memory_space<vmem>>, vector<1x8x256xbf16>
    %31 = vector.shape_cast %30 : vector<1x8x256xbf16> to vector<8x256xbf16>
    %cst_21 = arith.constant dense<0.000000e+00> : vector<8x8xf32>
    %32 = tpu.matmul %31, %19, %cst_21 {dimension_numbers = #tpu.dot_dimension_numbers<[1], [1], [0], [0], [0, 0, 1, 0], [], []>} : vector<8x256xbf16>, vector<8x256xbf16>, vector<8x8xf32> -> vector<8x8xf32>
    %c0_22 = arith.constant 0 : index
    %c0_23 = arith.constant 0 : index
    %33 = vector.load %arg6[%c0_22, %c0_23] : memref<16x1xf32, #tpu.memory_space<vmem>>, vector<8x1xf32>
    %34 = vector.broadcast %33 : vector<8x1xf32> to vector<8x8xf32>
    %35 = arith.addf %32, %34 : vector<8x8xf32>
    %c1_24 = arith.constant 1 : index
    %c0_25 = arith.constant 0 : index
    %c0_26 = arith.constant 0 : index
    %36 = vector.load %arg5[%c1_24, %c0_25, %c0_26] : memref<2x8x256xbf16, #tpu.memory_space<vmem>>, vector<1x8x256xbf16>
    %37 = vector.shape_cast %36 : vector<1x8x256xbf16> to vector<8x256xbf16>
    %cst_27 = arith.constant dense<0.000000e+00> : vector<8x8xf32>
    %38 = tpu.matmul %37, %29, %cst_27 {dimension_numbers = #tpu.dot_dimension_numbers<[1], [1], [0], [0], [0, 0, 1, 0], [], []>} : vector<8x256xbf16>, vector<8x256xbf16>, vector<8x8xf32> -> vector<8x8xf32>
    %c8 = arith.constant 8 : index
    %c0_28 = arith.constant 0 : index
    %39 = vector.load %arg6[%c8, %c0_28] : memref<16x1xf32, #tpu.memory_space<vmem>>, vector<8x1xf32>
    %40 = vector.broadcast %39 : vector<8x1xf32> to vector<8x8xf32>
    %41 = arith.addf %38, %40 : vector<8x8xf32>
    %cst_29 = arith.constant 0.000000e+00 : f32
    %42 = vector.broadcast %cst_29 : f32 to vector<8x8xf32>
    %43 = arith.maximumf %41, %42 : vector<8x8xf32>
    %cst_30 = arith.constant dense<0xFF800000> : vector<8xf32>
    %44 = vector.multi_reduction <maximumf>, %43, %cst_30 [0] : vector<8x8xf32> to vector<8xf32>
    %45 = vector.shape_cast %44 : vector<8xf32> to vector<1x8xf32>
    %46 = vector.broadcast %45 : vector<1x8xf32> to vector<8x8xf32>
    %47 = arith.subf %43, %46 : vector<8x8xf32>
    %48 = math.exp %47 : vector<8x8xf32>
    %cst_31 = arith.constant dense<0.000000e+00> : vector<8xf32>
    %49 = vector.multi_reduction <add>, %48, %cst_31 [0] : vector<8x8xf32> to vector<8xf32>
    %50 = vector.shape_cast %49 : vector<8xf32> to vector<1x8xf32>
    %51 = math.log %50 : vector<1x8xf32>
    %52 = vector.broadcast %51 : vector<1x8xf32> to vector<8x8xf32>
    %53 = arith.subf %47, %52 : vector<8x8xf32>
    %c0_32 = arith.constant 0 : index
    %c0_33 = arith.constant 0 : index
    %54 = vector.load %arg7[%c0_32, %c0_33] : memref<24x8xf32, #tpu.memory_space<vmem>>, vector<8x8xf32>
    tpu.vector_store %arg7[%c0_32, %c0_33], %35 {strides = array<i32>} : memref<24x8xf32, #tpu.memory_space<vmem>>, vector<8x8xf32>,
    %c8_34 = arith.constant 8 : index
    %c0_35 = arith.constant 0 : index
    %55 = vector.load %arg7[%c8_34, %c0_35] : memref<24x8xf32, #tpu.memory_space<vmem>>, vector<8x8xf32>
    tpu.vector_store %arg7[%c8_34, %c0_35], %53 {strides = array<i32>} : memref<24x8xf32, #tpu.memory_space<vmem>>, vector<8x8xf32>,
    %c16 = arith.constant 16 : index
    %c0_36 = arith.constant 0 : index
    %56 = vector.load %arg7[%c16, %c0_36] : memref<24x8xf32, #tpu.memory_space<vmem>>, vector<8x8xf32>
    tpu.vector_store %arg7[%c16, %c0_36], %43 {strides = array<i32>} : memref<24x8xf32, #tpu.memory_space<vmem>>, vector<8x8xf32>,
    return
  }
  func.func @transform_0(%arg0: i32) -> (i32, i32) {
    %c0_i32 = arith.constant 0 : i32
    %c0_i32_0 = arith.constant 0 : i32
    return %arg0, %c0_i32 : i32, i32
  }
  func.func @transform_1(%arg0: i32) -> (i32, i32) {
    %c0_i32 = arith.constant 0 : i32
    %c0_i32_0 = arith.constant 0 : i32
    %c0_i32_1 = arith.constant 0 : i32
    return %c0_i32, %c0_i32_0 : i32, i32
  }
  func.func @transform_2(%arg0: i32) -> (i32, i32) {
    %c0_i32 = arith.constant 0 : i32
    %c0_i32_0 = arith.constant 0 : i32
    %c0_i32_1 = arith.constant 0 : i32
    return %c0_i32, %c0_i32_0 : i32, i32
  }
  func.func @transform_3(%arg0: i32) -> (i32, i32, i32) {
    %c0_i32 = arith.constant 0 : i32
    %c0_i32_0 = arith.constant 0 : i32
    %c0_i32_1 = arith.constant 0 : i32
    %c0_i32_2 = arith.constant 0 : i32
    return %c0_i32, %c0_i32_0, %c0_i32_1 : i32, i32, i32
  }
  func.func @transform_4(%arg0: i32) -> (i32, i32, i32) {
    %c0_i32 = arith.constant 0 : i32
    %c0_i32_0 = arith.constant 0 : i32
    %c0_i32_1 = arith.constant 0 : i32
    %c0_i32_2 = arith.constant 0 : i32
    return %c0_i32, %c0_i32_0, %c0_i32_1 : i32, i32, i32
  }
  func.func @transform_5(%arg0: i32) -> (i32, i32) {
    %c0_i32 = arith.constant 0 : i32
    %c0_i32_0 = arith.constant 0 : i32
    %c0_i32_1 = arith.constant 0 : i32
    return %c0_i32, %c0_i32_0 : i32, i32
  }
  func.func @transform_6(%arg0: i32) -> (i32, i32) {
    %c0_i32 = arith.constant 0 : i32
    %c0_i32_0 = arith.constant 0 : i32
    return %c0_i32, %arg0 : i32, i32
  }
}

</mosaic_0001>

<llo_original>
// kernel: fc_q_forward.1
$region0: #{fc_q_forward.1}
  #allocation0 [shape = 'u32[]', space=smem, size = 0x4, offset = 0x4, fixed_abs, tag = 'smem constant byte address 0x4 - core index']
  #allocation1 [shape = 'u32[144,128]{1,0:T(1,128)}', space=vmem, size = 0x12000, scoped, tag = 'internal scratch']
  %s0 = inlined_call_operand.vmem [shape: f32[8,32], index: 0, kind: input, shape index: {}]
  %s1 = inlined_call_operand.hbm [shape: bf16[32,512], index: 1, kind: input, shape index: {}]
  %s2 = inlined_call_operand.vmem [shape: f32[2,512], index: 2, kind: input, shape index: {}]
  %s3 = inlined_call_operand.hbm [shape: bf16[2,256,256], index: 3, kind: input, shape index: {}]
  %s4 = inlined_call_operand.vmem [shape: bf16[2,8,256], index: 4, kind: input, shape index: {}]
  %s5 = inlined_call_operand.vmem [shape: f32[16,1], index: 5, kind: input, shape index: {}]
  %s6 = inlined_call_operand.vmem [shape: f32[24,8], index: 6, kind: output, shape index: {}]
  %s7 = sld [smem:[#allocation0]]
  $region42: #{fc_q_forward.1} parent=0
    _
  %s9 = ssub.s32 1, %s7
  %s10 = scalar_select 0, %s9, %s7
  $region1: #{fc_q_forward.1} parent=0
    #allocation2 [shape = 'u8[32768]{0}', space=vmem, size = 0x8000, scoped, tag = 'input window, operand 1, single buffered']
    #allocation3 [shape = 's32[1]{0}', space=sflag, size = 0x4, scoped, tag = 'scoped memory for fc_q_forward.1']
    #allocation4 [shape = 'u8[262144]{0}', space=vmem, size = 0x40000, scoped, tag = 'input window, operand 3, single buffered']
    #allocation5 [shape = 's32[1]{0}', space=sflag, size = 0x4, scoped, tag = 'scoped memory for fc_q_forward.1']
    %11 = vsyncpa [#allocation3], 0
    %12 = vsyncpa [#allocation5], 0
    // Predicated region
    $region2: #{fc_q_forward.1} parent=1 // pred_check
      _
    $region3: #{fc_q_forward.1} parent=1 // pred_check_branch
      %14 = sbr.rel (0) target = $region5
    $region4: #{fc_q_forward.1} parent=1 // pred_region
      _
    $region5: #{fc_q_forward.1} parent=1 // pred_fallthru
      _
    // Predicated region
    $region6: #{fc_q_forward.1} parent=1 // pred_check
      _
    $region7: #{fc_q_forward.1} parent=1 // pred_check_branch
      %16 = sbr.rel (0) target = $region9
    $region8: #{fc_q_forward.1} parent=1 // pred_region
      %s18 = ssub.s32 1024, 1024
      %19 = vsyncadd [#allocation3], %s18
      %s20 = sshll.u32 [#allocation2], 4
      %s21 = int_to_ptr.vmem [resolvable:$true] %s20
      %26 = dma.hbm_to_vmem [thread:$0]  %s1, 1024, %s21, [#allocation3], 256, 256, 16
    $region9: #{fc_q_forward.1} parent=1 // pred_fallthru
      _
    // Predicated region
    $region10: #{fc_q_forward.1} parent=1 // pred_check
      _
    $region11: #{fc_q_forward.1} parent=1 // pred_check_branch
      %28 = sbr.rel (0) target = $region13
    $region12: #{fc_q_forward.1} parent=1 // pred_region
      _
    $region13: #{fc_q_forward.1} parent=1 // pred_fallthru
      _
    // Predicated region
    $region14: #{fc_q_forward.1} parent=1 // pred_check
      _
    $region15: #{fc_q_forward.1} parent=1 // pred_check_branch
      %30 = sbr.rel (0) target = $region17
    $region16: #{fc_q_forward.1} parent=1 // pred_region
      %s32 = ssub.s32 8192, 8192
      %33 = vsyncadd [#allocation5], %s32
      %s34 = sshll.u32 [#allocation4], 4
      %s35 = int_to_ptr.vmem [resolvable:$true] %s34
      %40 = dma.hbm_to_vmem [thread:$0]  %s3, 8192, %s35, [#allocation5], 128, 128, 8
    $region17: #{fc_q_forward.1} parent=1 // pred_fallthru
      _
    // Predicated region
    $region18: #{fc_q_forward.1} parent=1 // pred_check
      _
    $region19: #{fc_q_forward.1} parent=1 // pred_check_branch
      %42 = sbr.rel (0) target = $region21
    $region20: #{fc_q_forward.1} parent=1 // pred_region
      _
    $region21: #{fc_q_forward.1} parent=1 // pred_fallthru
      _
    // Predicated region
    $region22: #{fc_q_forward.1} parent=1 // pred_check
      _
    $region23: #{fc_q_forward.1} parent=1 // pred_check_branch
      %44 = sbr.rel (0) target = $region25
    $region24: #{fc_q_forward.1} parent=1 // pred_region
      _
    $region25: #{fc_q_forward.1} parent=1 // pred_fallthru
      _
    // Predicated region
    $region26: #{fc_q_forward.1} parent=1 // pred_check
      _
    $region27: #{fc_q_forward.1} parent=1 // pred_check_branch
      %46 = sbr.rel (0) target = $region29
    $region28: #{fc_q_forward.1} parent=1 // pred_region
      %47 = dma.done [#allocation3], 1024
    $region29: #{fc_q_forward.1} parent=1 // pred_fallthru
      _
    // Predicated region
    $region30: #{fc_q_forward.1} parent=1 // pred_check
      _
    $region31: #{fc_q_forward.1} parent=1 // pred_check_branch
      %49 = sbr.rel (0) target = $region33
    $region32: #{fc_q_forward.1} parent=1 // pred_region
      %50 = dma.done [#allocation5], 8192
    $region33: #{fc_q_forward.1} parent=1 // pred_fallthru
      _
    %v52 = vld [vmem:[%s0] sm:$0xff]
    %v53 = vpack.c.bf16 %v52, %v52
    %v54 = vld [vmem:[#allocation2] sm:$0xff]
    %v55 = vld [vmem:[#allocation2 + $0x8] sm:$0xff]
    %v56 = vld [vmem:[#allocation2 + $0x10] sm:$0xff]
    %v57 = vld [vmem:[#allocation2 + $0x18] sm:$0xff]
    %v58 = vld [vmem:[#allocation2 + $0x20] sm:$0xff]
    %v59 = vld [vmem:[#allocation2 + $0x28] sm:$0xff]
    %v60 = vld [vmem:[#allocation2 + $0x30] sm:$0xff]
    %v61 = vld [vmem:[#allocation2 + $0x38] sm:$0xff]
    %v62 = vld [vmem:[%s2] ss:$2 sm:$0xf]
    %v64 = vlaneseq
    %v65 = vshrl.u32 %v64, 7
    %v66 = vsub.s32 0, %v65
    %v67 = vrot.slane %v62, %v66
    %v68 = vlaneseq
    %v69 = vshrl.u32 %v68, 7
    %v70 = vsub.s32 1, %v69
    %v71 = vrot.slane %v62, %v70
    %v72 = vlaneseq
    %v73 = vshrl.u32 %v72, 7
    %v74 = vsub.s32 2, %v73
    %v75 = vrot.slane %v62, %v74
    %v76 = vlaneseq
    %v77 = vshrl.u32 %v76, 7
    %v78 = vsub.s32 3, %v77
    %v79 = vrot.slane %v62, %v78
    %v92 = vunpack.c.l.b16 %v54
    %v93 = vunpack.c.h.b16 %v54
    %v94 = vunpack.c.l.b16 %v55
    %v95 = vunpack.c.h.b16 %v55
    %v96 = vunpack.c.l.b16 %v56
    %v97 = vunpack.c.h.b16 %v56
    %v98 = vunpack.c.l.b16 %v57
    %v99 = vunpack.c.h.b16 %v57
    %v100 = vunpack.c.l.b16 %v58
    %v101 = vunpack.c.h.b16 %v58
    %v102 = vunpack.c.l.b16 %v59
    %v103 = vunpack.c.h.b16 %v59
    %v104 = vunpack.c.l.b16 %v60
    %v105 = vunpack.c.h.b16 %v60
    %v106 = vunpack.c.l.b16 %v61
    %v107 = vunpack.c.h.b16 %v61
    %v108 = vpack.c.b16 %v96, %v92
    %v109 = vpack.c.b16 %v97, %v93
    %v110 = vpack.c.b16 %v98, %v94
    %v111 = vpack.c.b16 %v99, %v95
    %v112 = vpack.c.b16 %v104, %v100
    %v113 = vpack.c.b16 %v105, %v101
    %v114 = vpack.c.b16 %v106, %v102
    %v115 = vpack.c.b16 %v107, %v103
    %vm124 = vcmask 261120
    %v126 = vsel %vm124, %v53, 0
    %128 = vmatprep.subr.bf16.mxu0 %v109
    %129 = vmatpush1.bf16.msra.mxu0 %v108
    %130 = vmatprep.subr.bf16.mxu0 %v113
    %131 = vmatpush1.bf16.msra.mxu0 %v112
    %132 = vmatprep.subr.bf16.mxu0 0
    %133 = vmatpush1.bf16.msra.mxu0 0
    %134 = vmatprep.subr.bf16.mxu0 0
    %135 = vmatpush1.bf16.msra.mxu0 0
    %136 = vmatprep.subr.bf16.mxu0 0
    %137 = vmatpush1.bf16.msra.mxu0 0
    %138 = vmatprep.subr.bf16.mxu0 0
    %139 = vmatpush1.bf16.msra.mxu0 0
    %140 = vmatprep.subr.bf16.mxu0 0
    %141 = vmatpush1.bf16.msra.mxu0 0
    %142 = vmatprep.subr.bf16.mxu0 0
    %143 = vmatpush1.bf16.msra.mxu0 0
    %144 = vmatprep.subr.bf16.mxu0 0
    %145 = vmatpush1.bf16.msra.mxu0 0
    %146 = vmatprep.subr.bf16.mxu0 0
    %147 = vmatpush1.bf16.msra.mxu0 0
    %148 = vmatprep.subr.bf16.mxu0 0
    %149 = vmatpush1.bf16.msra.mxu0 0
    %150 = vmatprep.subr.bf16.mxu0 0
    %151 = vmatpush1.bf16.msra.mxu0 0
    %152 = vmatprep.subr.bf16.mxu0 0
    %153 = vmatpush1.bf16.msra.mxu0 0
    %154 = vmatprep.subr.bf16.mxu0 0
    %155 = vmatpush1.bf16.msra.mxu0 0
    %156 = vmatprep.subr.bf16.mxu0 0
    %157 = vmatpush1.bf16.msra.mxu0 0
    %158 = vmatprep.subr.bf16.mxu0 0
    %159 = vmatpush1.bf16.msra.mxu0 0
    %160 = vmatprep.mubr.bf16.mxu0 0
    %161 = vmatmul.mubr.bf16.gmra.mrb[0].mxu0 %v126
    %v162 = vpop.f32.mrb[0].mxu0
    %v163 = vadd.f32 %v67, %v162
    %v164 = vpop.f32.mrb[0].mxu0
    %v165 = vadd.f32 %v71, %v164
    %v166 = vpop.f32.mrb[0].mxu0
    %v167 = vpop.f32.mrb[0].mxu0
    %168 = vdwg.mxu0
    %169 = vmatprep.subr.bf16.mxu0 %v111
    %170 = vmatpush1.bf16.msra.mxu0 %v110
    %171 = vmatprep.subr.bf16.mxu0 %v115
    %172 = vmatpush1.bf16.msra.mxu0 %v114
    %173 = vmatprep.subr.bf16.mxu0 0
    %174 = vmatpush1.bf16.msra.mxu0 0
    %175 = vmatprep.subr.bf16.mxu0 0
    %176 = vmatpush1.bf16.msra.mxu0 0
    %177 = vmatprep.subr.bf16.mxu0 0
    %178 = vmatpush1.bf16.msra.mxu0 0
    %179 = vmatprep.subr.bf16.mxu0 0
    %180 = vmatpush1.bf16.msra.mxu0 0
    %181 = vmatprep.subr.bf16.mxu0 0
    %182 = vmatpush1.bf16.msra.mxu0 0
    %183 = vmatprep.subr.bf16.mxu0 0
    %184 = vmatpush1.bf16.msra.mxu0 0
    %185 = vmatprep.subr.bf16.mxu0 0
    %186 = vmatpush1.bf16.msra.mxu0 0
    %187 = vmatprep.subr.bf16.mxu0 0
    %188 = vmatpush1.bf16.msra.mxu0 0
    %189 = vmatprep.subr.bf16.mxu0 0
    %190 = vmatpush1.bf16.msra.mxu0 0
    %191 = vmatprep.subr.bf16.mxu0 0
    %192 = vmatpush1.bf16.msra.mxu0 0
    %193 = vmatprep.subr.bf16.mxu0 0
    %194 = vmatpush1.bf16.msra.mxu0 0
    %195 = vmatprep.subr.bf16.mxu0 0
    %196 = vmatpush1.bf16.msra.mxu0 0
    %197 = vmatprep.subr.bf16.mxu0 0
    %198 = vmatpush1.bf16.msra.mxu0 0
    %199 = vmatprep.subr.bf16.mxu0 0
    %200 = vmatpush1.bf16.msra.mxu0 0
    %201 = vmatprep.mubr.bf16.mxu0 0
    %202 = vmatmul.mubr.bf16.gmra.mrb[0].mxu0 %v126
    %v203 = vpop.f32.mrb[0].mxu0
    %v204 = vadd.f32 %v75, %v203
    %v205 = vpop.f32.mrb[0].mxu0
    %v206 = vadd.f32 %v79, %v205
    %v207 = vpop.f32.mrb[0].mxu0
    %v208 = vpop.f32.mrb[0].mxu0
    %209 = vdwg.mxu0
    %v210 = vmax.f32 %v163, 0.0
    %v211 = vmax.f32 %v165, 0.0
    %v212 = vmax.f32 %v204, 0.0
    %v213 = vmax.f32 %v206, 0.0
    %v214 = vpack.c.bf16 %v210, %v210
    %v215 = vpack.c.bf16 %v211, %v211
    %v216 = vpack.c.bf16 %v212, %v212
    %v217 = vpack.c.bf16 %v213, %v213
    %v218 = vld [vmem:[#allocation4] sm:$0xff]
    %v219 = vld [vmem:[#allocation4 + $0x8] sm:$0xff]
    %v220 = vld [vmem:[#allocation4 + $0x10] sm:$0xff]
    %v221 = vld [vmem:[#allocation4 + $0x18] sm:$0xff]
    %v222 = vld [vmem:[#allocation4 + $0x20] sm:$0xff]
    %v223 = vld [vmem:[#allocation4 + $0x28] sm:$0xff]
    %v224 = vld [vmem:[#allocation4 + $0x30] sm:$0xff]
    %v225 = vld [vmem:[#allocation4 + $0x38] sm:$0xff]
    %v226 = vld [vmem:[#allocation4 + $0x40] sm:$0xff]
    %v227 = vld [vmem:[#allocation4 + $0x48] sm:$0xff]
    %v228 = vld [vmem:[#allocation4 + $0x50] sm:$0xff]
    %v229 = vld [vmem:[#allocation4 + $0x58] sm:$0xff]
    %v230 = vld [vmem:[#allocation4 + $0x60] sm:$0xff]
    %v231 = vld [vmem:[#allocation4 + $0x68] sm:$0xff]
    %v232 = vld [vmem:[#allocation4 + $0x70] sm:$0xff]
    %v233 = vld [vmem:[#allocation4 + $0x78] sm:$0xff]
    %v234 = vld [vmem:[#allocation4 + $0x80] sm:$0xff]
    %v235 = vld [vmem:[#allocation4 + $0x88] sm:$0xff]
    %v236 = vld [vmem:[#allocation4 + $0x90] sm:$0xff]
    %v237 = vld [vmem:[#allocation4 + $0x98] sm:$0xff]
    %v238 = vld [vmem:[#allocation4 + $0xa0] sm:$0xff]
    %v239 = vld [vmem:[#allocation4 + $0xa8] sm:$0xff]
    %v240 = vld [vmem:[#allocation4 + $0xb0] sm:$0xff]
    %v241 = vld [vmem:[#allocation4 + $0xb8] sm:$0xff]
    %v242 = vld [vmem:[#allocation4 + $0xc0] sm:$0xff]
    %v243 = vld [vmem:[#allocation4 + $0xc8] sm:$0xff]
    %v244 = vld [vmem:[#allocation4 + $0xd0] sm:$0xff]
    %v245 = vld [vmem:[#allocation4 + $0xd8] sm:$0xff]
    %v246 = vld [vmem:[#allocation4 + $0xe0] sm:$0xff]
    %v247 = vld [vmem:[#allocation4 + $0xe8] sm:$0xff]
    %v248 = vld [vmem:[#allocation4 + $0xf0] sm:$0xff]
    %v249 = vld [vmem:[#allocation4 + $0xf8] sm:$0xff]
    %s250 = scalar_lea.vmem %s2, 1
    %v251 = vld [vmem:[%s250] ss:$2 sm:$0x3]
    %v253 = vlaneseq
    %v254 = vshrl.u32 %v253, 7
    %v255 = vsub.s32 0, %v254
    %v256 = vrot.slane %v251, %v255
    %v257 = vlaneseq
    %v258 = vshrl.u32 %v257, 7
    %v259 = vsub.s32 1, %v258
    %v260 = vrot.slane %v251, %v259
    %v295 = vunpack.c.l.b16 %v218
    %v296 = vunpack.c.h.b16 %v218
    %v297 = vunpack.c.l.b16 %v219
    %v298 = vunpack.c.h.b16 %v219
    %v299 = vunpack.c.l.b16 %v220
    %v300 = vunpack.c.h.b16 %v220
    %v301 = vunpack.c.l.b16 %v221
    %v302 = vunpack.c.h.b16 %v221
    %v303 = vunpack.c.l.b16 %v222
    %v304 = vunpack.c.h.b16 %v222
    %v305 = vunpack.c.l.b16 %v223
    %v306 = vunpack.c.h.b16 %v223
    %v307 = vunpack.c.l.b16 %v224
    %v308 = vunpack.c.h.b16 %v224
    %v309 = vunpack.c.l.b16 %v225
    %v310 = vunpack.c.h.b16 %v225
    %v311 = vunpack.c.l.b16 %v226
    %v312 = vunpack.c.h.b16 %v226
    %v313 = vunpack.c.l.b16 %v227
    %v314 = vunpack.c.h.b16 %v227
    %v315 = vunpack.c.l.b16 %v228
    %v316 = vunpack.c.h.b16 %v228
    %v317 = vunpack.c.l.b16 %v229
    %v318 = vunpack.c.h.b16 %v229
    %v319 = vunpack.c.l.b16 %v230
    %v320 = vunpack.c.h.b16 %v230
    %v321 = vunpack.c.l.b16 %v231
    %v322 = vunpack.c.h.b16 %v231
    %v323 = vunpack.c.l.b16 %v232
    %v324 = vunpack.c.h.b16 %v232
    %v325 = vunpack.c.l.b16 %v233
    %v326 = vunpack.c.h.b16 %v233
    %v327 = vunpack.c.l.b16 %v234
    %v328 = vunpack.c.h.b16 %v234
    %v329 = vunpack.c.l.b16 %v235
    %v330 = vunpack.c.h.b16 %v235
    %v331 = vunpack.c.l.b16 %v236
    %v332 = vunpack.c.h.b16 %v236
    %v333 = vunpack.c.l.b16 %v237
    %v334 = vunpack.c.h.b16 %v237
    %v335 = vunpack.c.l.b16 %v238
    %v336 = vunpack.c.h.b16 %v238
    %v337 = vunpack.c.l.b16 %v239
    %v338 = vunpack.c.h.b16 %v239
    %v339 = vunpack.c.l.b16 %v240
    %v340 = vunpack.c.h.b16 %v240
    %v341 = vunpack.c.l.b16 %v241
    %v342 = vunpack.c.h.b16 %v241
    %v343 = vunpack.c.l.b16 %v242
    %v344 = vunpack.c.h.b16 %v242
    %v345 = vunpack.c.l.b16 %v243
    %v346 = vunpack.c.h.b16 %v243
    %v347 = vunpack.c.l.b16 %v244
    %v348 = vunpack.c.h.b16 %v244
    %v349 = vunpack.c.l.b16 %v245
    %v350 = vunpack.c.h.b16 %v245
    %v351 = vunpack.c.l.b16 %v246
    %v352 = vunpack.c.h.b16 %v246
    %v353 = vunpack.c.l.b16 %v247
    %v354 = vunpack.c.h.b16 %v247
    %v355 = vunpack.c.l.b16 %v248
    %v356 = vunpack.c.h.b16 %v248
    %v357 = vunpack.c.l.b16 %v249
    %v358 = vunpack.c.h.b16 %v249
    %v359 = vpack.c.b16 %v297, %v295
    %v360 = vpack.c.b16 %v298, %v296
    %v361 = vpack.c.b16 %v301, %v299
    %v362 = vpack.c.b16 %v302, %v300
    %v363 = vpack.c.b16 %v305, %v303
    %v364 = vpack.c.b16 %v306, %v304
    %v365 = vpack.c.b16 %v309, %v307
    %v366 = vpack.c.b16 %v310, %v308
    %v367 = vpack.c.b16 %v313, %v311
    %v368 = vpack.c.b16 %v314, %v312
    %v369 = vpack.c.b16 %v317, %v315
    %v370 = vpack.c.b16 %v318, %v316
    %v371 = vpack.c.b16 %v321, %v319
    %v372 = vpack.c.b16 %v322, %v320
    %v373 = vpack.c.b16 %v325, %v323
    %v374 = vpack.c.b16 %v326, %v324
    %v375 = vpack.c.b16 %v329, %v327
    %v376 = vpack.c.b16 %v330, %v328
    %v377 = vpack.c.b16 %v333, %v331
    %v378 = vpack.c.b16 %v334, %v332
    %v379 = vpack.c.b16 %v337, %v335
    %v380 = vpack.c.b16 %v338, %v336
    %v381 = vpack.c.b16 %v341, %v339
    %v382 = vpack.c.b16 %v342, %v340
    %v383 = vpack.c.b16 %v345, %v343
    %v384 = vpack.c.b16 %v346, %v344
    %v385 = vpack.c.b16 %v349, %v347
    %v386 = vpack.c.b16 %v350, %v348
    %v387 = vpack.c.b16 %v353, %v351
    %v388 = vpack.c.b16 %v354, %v352
    %v389 = vpack.c.b16 %v357, %v355
    %v390 = vpack.c.b16 %v358, %v356
    %423 = vmatprep.subr.bf16.mxu0 %v360
    %424 = vmatpush1.bf16.msra.mxu0 %v359
    %425 = vmatprep.subr.bf16.mxu0 %v362
    %426 = vmatpush1.bf16.msra.mxu0 %v361
    %427 = vmatprep.subr.bf16.mxu0 %v364
    %428 = vmatpush1.bf16.msra.mxu0 %v363
    %429 = vmatprep.subr.bf16.mxu0 %v366
    %430 = vmatpush1.bf16.msra.mxu0 %v365
    %431 = vmatprep.subr.bf16.mxu0 %v368
    %432 = vmatpush1.bf16.msra.mxu0 %v367
    %433 = vmatprep.subr.bf16.mxu0 %v370
    %434 = vmatpush1.bf16.msra.mxu0 %v369
    %435 = vmatprep.subr.bf16.mxu0 %v372
    %436 = vmatpush1.bf16.msra.mxu0 %v371
    %437 = vmatprep.subr.bf16.mxu0 %v374
    %438 = vmatpush1.bf16.msra.mxu0 %v373
    %439 = vmatprep.subr.bf16.mxu0 %v376
    %440 = vmatpush1.bf16.msra.mxu0 %v375
    %441 = vmatprep.subr.bf16.mxu0 %v378
    %442 = vmatpush1.bf16.msra.mxu0 %v377
    %443 = vmatprep.subr.bf16.mxu0 %v380
    %444 = vmatpush1.bf16.msra.mxu0 %v379
    %445 = vmatprep.subr.bf16.mxu0 %v382
    %446 = vmatpush1.bf16.msra.mxu0 %v381
    %447 = vmatprep.subr.bf16.mxu0 %v384
    %448 = vmatpush1.bf16.msra.mxu0 %v383
    %449 = vmatprep.subr.bf16.mxu0 %v386
    %450 = vmatpush1.bf16.msra.mxu0 %v385
    %451 = vmatprep.subr.bf16.mxu0 %v388
    %452 = vmatpush1.bf16.msra.mxu0 %v387
    %453 = vmatprep.subr.bf16.mxu0 %v390
    %454 = vmatpush1.bf16.msra.mxu0 %v389
    %455 = vmatprep.mubr.bf16.mxu0 %v215
    %456 = vmatmul.mubr.bf16.gmra.mrb[0].mxu0 %v214
    %v457 = vpop.f32.mrb[0].mxu0
    %v458 = vadd.f32 %v256, %v457
    %v459 = vpop.f32.mrb[0].mxu0
    %v460 = vadd.f32 %v260, %v459
    %v461 = vpop.f32.mrb[0].mxu0
    %v462 = vpop.f32.mrb[0].mxu0
    %463 = vdwg.mxu0
    %v464 = vmax.f32 %v458, 0.0
    %v465 = vmax.f32 %v460, 0.0
    %v466 = vpack.c.bf16 %v464, %v464
    %v467 = vpack.c.bf16 %v465, %v465
    %s468 = scalar_lea.vmem [#allocation4], 256
    %v469 = vld [vmem:[%s468] sm:$0xff]
    %v470 = vld [vmem:[%s468 + $0x8] sm:$0xff]
    %v471 = vld [vmem:[%s468 + $0x10] sm:$0xff]
    %v472 = vld [vmem:[%s468 + $0x18] sm:$0xff]
    %v473 = vld [vmem:[%s468 + $0x20] sm:$0xff]
    %v474 = vld [vmem:[%s468 + $0x28] sm:$0xff]
    %v475 = vld [vmem:[%s468 + $0x30] sm:$0xff]
    %v476 = vld [vmem:[%s468 + $0x38] sm:$0xff]
    %v477 = vld [vmem:[%s468 + $0x40] sm:$0xff]
    %v478 = vld [vmem:[%s468 + $0x48] sm:$0xff]
    %v479 = vld [vmem:[%s468 + $0x50] sm:$0xff]
    %v480 = vld [vmem:[%s468 + $0x58] sm:$0xff]
    %v481 = vld [vmem:[%s468 + $0x60] sm:$0xff]
    %v482 = vld [vmem:[%s468 + $0x68] sm:$0xff]
    %v483 = vld [vmem:[%s468 + $0x70] sm:$0xff]
    %v484 = vld [vmem:[%s468 + $0x78] sm:$0xff]
    %v485 = vld [vmem:[%s468 + $0x80] sm:$0xff]
    %v486 = vld [vmem:[%s468 + $0x88] sm:$0xff]
    %v487 = vld [vmem:[%s468 + $0x90] sm:$0xff]
    %v488 = vld [vmem:[%s468 + $0x98] sm:$0xff]
    %v489 = vld [vmem:[%s468 + $0xa0] sm:$0xff]
    %v490 = vld [vmem:[%s468 + $0xa8] sm:$0xff]
    %v491 = vld [vmem:[%s468 + $0xb0] sm:$0xff]
    %v492 = vld [vmem:[%s468 + $0xb8] sm:$0xff]
    %v493 = vld [vmem:[%s468 + $0xc0] sm:$0xff]
    %v494 = vld [vmem:[%s468 + $0xc8] sm:$0xff]
    %v495 = vld [vmem:[%s468 + $0xd0] sm:$0xff]
    %v496 = vld [vmem:[%s468 + $0xd8] sm:$0xff]
    %v497 = vld [vmem:[%s468 + $0xe0] sm:$0xff]
    %v498 = vld [vmem:[%s468 + $0xe8] sm:$0xff]
    %v499 = vld [vmem:[%s468 + $0xf0] sm:$0xff]
    %v500 = vld [vmem:[%s468 + $0xf8] sm:$0xff]
    %s501 = scalar_lea.vmem %s2, 5
    %v502 = vld [vmem:[%s501] ss:$2 sm:$0x3]
    %v504 = vlaneseq
    %v505 = vshrl.u32 %v504, 7
    %v506 = vsub.s32 0, %v505
    %v507 = vrot.slane %v502, %v506
    %v508 = vlaneseq
    %v509 = vshrl.u32 %v508, 7
    %v510 = vsub.s32 1, %v509
    %v511 = vrot.slane %v502, %v510
    %v546 = vunpack.c.l.b16 %v469
    %v547 = vunpack.c.h.b16 %v469
    %v548 = vunpack.c.l.b16 %v470
    %v549 = vunpack.c.h.b16 %v470
    %v550 = vunpack.c.l.b16 %v471
    %v551 = vunpack.c.h.b16 %v471
    %v552 = vunpack.c.l.b16 %v472
    %v553 = vunpack.c.h.b16 %v472
    %v554 = vunpack.c.l.b16 %v473
    %v555 = vunpack.c.h.b16 %v473
    %v556 = vunpack.c.l.b16 %v474
    %v557 = vunpack.c.h.b16 %v474
    %v558 = vunpack.c.l.b16 %v475
    %v559 = vunpack.c.h.b16 %v475
    %v560 = vunpack.c.l.b16 %v476
    %v561 = vunpack.c.h.b16 %v476
    %v562 = vunpack.c.l.b16 %v477
    %v563 = vunpack.c.h.b16 %v477
    %v564 = vunpack.c.l.b16 %v478
    %v565 = vunpack.c.h.b16 %v478
    %v566 = vunpack.c.l.b16 %v479
    %v567 = vunpack.c.h.b16 %v479
    %v568 = vunpack.c.l.b16 %v480
    %v569 = vunpack.c.h.b16 %v480
    %v570 = vunpack.c.l.b16 %v481
    %v571 = vunpack.c.h.b16 %v481
    %v572 = vunpack.c.l.b16 %v482
    %v573 = vunpack.c.h.b16 %v482
    %v574 = vunpack.c.l.b16 %v483
    %v575 = vunpack.c.h.b16 %v483
    %v576 = vunpack.c.l.b16 %v484
    %v577 = vunpack.c.h.b16 %v484
    %v578 = vunpack.c.l.b16 %v485
    %v579 = vunpack.c.h.b16 %v485
    %v580 = vunpack.c.l.b16 %v486
    %v581 = vunpack.c.h.b16 %v486
    %v582 = vunpack.c.l.b16 %v487
    %v583 = vunpack.c.h.b16 %v487
    %v584 = vunpack.c.l.b16 %v488
    %v585 = vunpack.c.h.b16 %v488
    %v586 = vunpack.c.l.b16 %v489
    %v587 = vunpack.c.h.b16 %v489
    %v588 = vunpack.c.l.b16 %v490
    %v589 = vunpack.c.h.b16 %v490
    %v590 = vunpack.c.l.b16 %v491
    %v591 = vunpack.c.h.b16 %v491
    %v592 = vunpack.c.l.b16 %v492
    %v593 = vunpack.c.h.b16 %v492
    %v594 = vunpack.c.l.b16 %v493
    %v595 = vunpack.c.h.b16 %v493
    %v596 = vunpack.c.l.b16 %v494
    %v597 = vunpack.c.h.b16 %v494
    %v598 = vunpack.c.l.b16 %v495
    %v599 = vunpack.c.h.b16 %v495
    %v600 = vunpack.c.l.b16 %v496
    %v601 = vunpack.c.h.b16 %v496
    %v602 = vunpack.c.l.b16 %v497
    %v603 = vunpack.c.h.b16 %v497
    %v604 = vunpack.c.l.b16 %v498
    %v605 = vunpack.c.h.b16 %v498
    %v606 = vunpack.c.l.b16 %v499
    %v607 = vunpack.c.h.b16 %v499
    %v608 = vunpack.c.l.b16 %v500
    %v609 = vunpack.c.h.b16 %v500
    %v610 = vpack.c.b16 %v548, %v546
    %v611 = vpack.c.b16 %v549, %v547
    %v612 = vpack.c.b16 %v552, %v550
    %v613 = vpack.c.b16 %v553, %v551
    %v614 = vpack.c.b16 %v556, %v554
    %v615 = vpack.c.b16 %v557, %v555
    %v616 = vpack.c.b16 %v560, %v558
    %v617 = vpack.c.b16 %v561, %v559
    %v618 = vpack.c.b16 %v564, %v562
    %v619 = vpack.c.b16 %v565, %v563
    %v620 = vpack.c.b16 %v568, %v566
    %v621 = vpack.c.b16 %v569, %v567
    %v622 = vpack.c.b16 %v572, %v570
    %v623 = vpack.c.b16 %v573, %v571
    %v624 = vpack.c.b16 %v576, %v574
    %v625 = vpack.c.b16 %v577, %v575
    %v626 = vpack.c.b16 %v580, %v578
    %v627 = vpack.c.b16 %v581, %v579
    %v628 = vpack.c.b16 %v584, %v582
    %v629 = vpack.c.b16 %v585, %v583
    %v630 = vpack.c.b16 %v588, %v586
    %v631 = vpack.c.b16 %v589, %v587
    %v632 = vpack.c.b16 %v592, %v590
    %v633 = vpack.c.b16 %v593, %v591
    %v634 = vpack.c.b16 %v596, %v594
    %v635 = vpack.c.b16 %v597, %v595
    %v636 = vpack.c.b16 %v600, %v598
    %v637 = vpack.c.b16 %v601, %v599
    %v638 = vpack.c.b16 %v604, %v602
    %v639 = vpack.c.b16 %v605, %v603
    %v640 = vpack.c.b16 %v608, %v606
    %v641 = vpack.c.b16 %v609, %v607
    %674 = vmatprep.subr.bf16.mxu0 %v611
    %675 = vmatpush1.bf16.msra.mxu0 %v610
    %676 = vmatprep.subr.bf16.mxu0 %v613
    %677 = vmatpush1.bf16.msra.mxu0 %v612
    %678 = vmatprep.subr.bf16.mxu0 %v615
    %679 = vmatpush1.bf16.msra.mxu0 %v614
    %680 = vmatprep.subr.bf16.mxu0 %v617
    %681 = vmatpush1.bf16.msra.mxu0 %v616
    %682 = vmatprep.subr.bf16.mxu0 %v619
    %683 = vmatpush1.bf16.msra.mxu0 %v618
    %684 = vmatprep.subr.bf16.mxu0 %v621
    %685 = vmatpush1.bf16.msra.mxu0 %v620
    %686 = vmatprep.subr.bf16.mxu0 %v623
    %687 = vmatpush1.bf16.msra.mxu0 %v622
    %688 = vmatprep.subr.bf16.mxu0 %v625
    %689 = vmatpush1.bf16.msra.mxu0 %v624
    %690 = vmatprep.subr.bf16.mxu0 %v627
    %691 = vmatpush1.bf16.msra.mxu0 %v626
    %692 = vmatprep.subr.bf16.mxu0 %v629
    %693 = vmatpush1.bf16.msra.mxu0 %v628
    %694 = vmatprep.subr.bf16.mxu0 %v631
    %695 = vmatpush1.bf16.msra.mxu0 %v630
    %696 = vmatprep.subr.bf16.mxu0 %v633
    %697 = vmatpush1.bf16.msra.mxu0 %v632
    %698 = vmatprep.subr.bf16.mxu0 %v635
    %699 = vmatpush1.bf16.msra.mxu0 %v634
    %700 = vmatprep.subr.bf16.mxu0 %v637
    %701 = vmatpush1.bf16.msra.mxu0 %v636
    %702 = vmatprep.subr.bf16.mxu0 %v639
    %703 = vmatpush1.bf16.msra.mxu0 %v638
    %704 = vmatprep.subr.bf16.mxu0 %v641
    %705 = vmatpush1.bf16.msra.mxu0 %v640
    %706 = vmatprep.mubr.bf16.mxu0 %v217
    %707 = vmatmul.mubr.bf16.gmra.mrb[0].mxu0 %v216
    %v708 = vpop.f32.mrb[0].mxu0
    %v709 = vadd.f32 %v507, %v708
    %v710 = vpop.f32.mrb[0].mxu0
    %v711 = vadd.f32 %v511, %v710
    %v712 = vpop.f32.mrb[0].mxu0
    %v713 = vpop.f32.mrb[0].mxu0
    %714 = vdwg.mxu0
    %v715 = vmax.f32 %v709, 0.0
    %v716 = vmax.f32 %v711, 0.0
    %v717 = vpack.c.bf16 %v715, %v715
    %v718 = vpack.c.bf16 %v716, %v716
    %v719 = vld [vmem:[%s4] sm:$0xff]
    %v720 = vld [vmem:[%s5] sm:$0xff]
    %722 = vset.pattern.permute.xlu0 0
    %723 = vperm.xlu0 %722, %v720
    %v724 = vpop.permute.xlu0 %723
    %v727 = vunpack.c.l.b16 %v719
    %v728 = vunpack.c.h.b16 %v719
    %v729 = vpack.c.b16 %v727, %v727
    %v730 = vpack.c.b16 %v728, %v728
    %733 = vmatprep.subr.bf16.mxu0 %v467
    %734 = vmatpush1.bf16.xpose.msra.mxu0 %v466
    %735 = vmatprep.subr.bf16.mxu0 0
    %736 = vmatpush1.bf16.xpose.msra.mxu0 0
    %737 = vmatprep.subr.bf16.mxu0 0
    %738 = vmatpush1.bf16.xpose.msra.mxu0 0
    %739 = vmatprep.subr.bf16.mxu0 0
    %740 = vmatpush1.bf16.xpose.msra.mxu0 0
    %741 = vmatprep.subr.bf16.mxu0 0
    %742 = vmatpush1.bf16.xpose.msra.mxu0 0
    %743 = vmatprep.subr.bf16.mxu0 0
    %744 = vmatpush1.bf16.xpose.msra.mxu0 0
    %745 = vmatprep.subr.bf16.mxu0 0
    %746 = vmatpush1.bf16.xpose.msra.mxu0 0
    %747 = vmatprep.subr.bf16.mxu0 0
    %748 = vmatpush1.bf16.xpose.msra.mxu0 0
    %749 = vmatprep.subr.bf16.mxu0 0
    %750 = vmatpush1.bf16.xpose.msra.mxu0 0
    %751 = vmatprep.subr.bf16.mxu0 0
    %752 = vmatpush1.bf16.xpose.msra.mxu0 0
    %753 = vmatprep.subr.bf16.mxu0 0
    %754 = vmatpush1.bf16.xpose.msra.mxu0 0
    %755 = vmatprep.subr.bf16.mxu0 0
    %756 = vmatpush1.bf16.xpose.msra.mxu0 0
    %757 = vmatprep.subr.bf16.mxu0 0
    %758 = vmatpush1.bf16.xpose.msra.mxu0 0
    %759 = vmatprep.subr.bf16.mxu0 0
    %760 = vmatpush1.bf16.xpose.msra.mxu0 0
    %761 = vmatprep.subr.bf16.mxu0 0
    %762 = vmatpush1.bf16.xpose.msra.mxu0 0
    %763 = vmatprep.subr.bf16.mxu0 0
    %764 = vmatpush1.bf16.xpose.msra.mxu0 0
    %765 = vmatprep.mubr.bf16.mxu0 %v730
    %766 = vmatmul.mubr.bf16.gmra.mrb[0].mxu0 %v729
    %v767 = vpop.f32.mrb[0].mxu0
    %v768 = vadd.f32 %v724, %v767
    %v769 = vpop.f32.mrb[0].mxu0
    %v770 = vpop.f32.mrb[0].mxu0
    %v771 = vpop.f32.mrb[0].mxu0
    %772 = vdwg.mxu0
    %s773 = scalar_lea.vmem %s4, 8
    %v774 = vld [vmem:[%s773] sm:$0xff]
    %v775 = vld [vmem:[%s5 + $0x8] sm:$0xff]
    %777 = vset.pattern.permute.xlu0 0
    %778 = vperm.xlu0 %777, %v775
    %v779 = vpop.permute.xlu0 %778
    %v782 = vunpack.c.l.b16 %v774
    %v783 = vunpack.c.h.b16 %v774
    %v784 = vpack.c.b16 %v782, %v782
    %v785 = vpack.c.b16 %v783, %v783
    %788 = vmatprep.subr.bf16.mxu0 %v718
    %789 = vmatpush1.bf16.xpose.msra.mxu0 %v717
    %790 = vmatprep.subr.bf16.mxu0 0
    %791 = vmatpush1.bf16.xpose.msra.mxu0 0
    %792 = vmatprep.subr.bf16.mxu0 0
    %793 = vmatpush1.bf16.xpose.msra.mxu0 0
    %794 = vmatprep.subr.bf16.mxu0 0
    %795 = vmatpush1.bf16.xpose.msra.mxu0 0
    %796 = vmatprep.subr.bf16.mxu0 0
    %797 = vmatpush1.bf16.xpose.msra.mxu0 0
    %798 = vmatprep.subr.bf16.mxu0 0
    %799 = vmatpush1.bf16.xpose.msra.mxu0 0
    %800 = vmatprep.subr.bf16.mxu0 0
    %801 = vmatpush1.bf16.xpose.msra.mxu0 0
    %802 = vmatprep.subr.bf16.mxu0 0
    %803 = vmatpush1.bf16.xpose.msra.mxu0 0
    %804 = vmatprep.subr.bf16.mxu0 0
    %805 = vmatpush1.bf16.xpose.msra.mxu0 0
    %806 = vmatprep.subr.bf16.mxu0 0
    %807 = vmatpush1.bf16.xpose.msra.mxu0 0
    %808 = vmatprep.subr.bf16.mxu0 0
    %809 = vmatpush1.bf16.xpose.msra.mxu0 0
    %810 = vmatprep.subr.bf16.mxu0 0
    %811 = vmatpush1.bf16.xpose.msra.mxu0 0
    %812 = vmatprep.subr.bf16.mxu0 0
    %813 = vmatpush1.bf16.xpose.msra.mxu0 0
    %814 = vmatprep.subr.bf16.mxu0 0
    %815 = vmatpush1.bf16.xpose.msra.mxu0 0
    %816 = vmatprep.subr.bf16.mxu0 0
    %817 = vmatpush1.bf16.xpose.msra.mxu0 0
    %818 = vmatprep.subr.bf16.mxu0 0
    %819 = vmatpush1.bf16.xpose.msra.mxu0 0
    %820 = vmatprep.mubr.bf16.mxu0 %v785
    %821 = vmatmul.mubr.bf16.gmra.mrb[0].mxu0 %v784
    %v822 = vpop.f32.mrb[0].mxu0
    %v823 = vadd.f32 %v779, %v822
    %v824 = vpop.f32.mrb[0].mxu0
    %v825 = vpop.f32.mrb[0].mxu0
    %v826 = vpop.f32.mrb[0].mxu0
    %827 = vdwg.mxu0
    %v828 = vmax.f32 %v823, 0.0
    %vm829 = vcmask 64512
    %v830 = vsel %vm829, %v828, -inf
    %v831 = vrot.slane %v830, 4
    %v832 = vmax.f32 %v830, %v831
    %v833 = vrot.slane %v832, 2
    %v834 = vmax.f32 %v832, %v833
    %v835 = vrot.slane %v834, 1
    %v836 = vmax.f32 %v834, %v835
    %v837 = vsub.f32 %v828, %v836
    %v838 = vmul.f32 %v837, 1.442695
    %v839 = vpow.pop %v838
    %v840 = vsel %vm829, %v839, 0.0
    %v841 = vrot.slane %v840, 4
    %v842 = vadd.f32 %v840, %v841
    %v843 = vrot.slane %v842, 2
    %v844 = vadd.f32 %v842, %v843
    %v845 = vrot.slane %v844, 1
    %v846 = vadd.f32 %v844, %v845
    %v847 = vlog2.pop %v846
    %v848 = vmul.f32 %v847, 0.6931472
    %v849 = vsub.f32 %v837, %v848
    %850 = vst.msk [vmem:[%s6] sm:$0xff] %vm829, %v768
    %851 = vst.msk [vmem:[%s6 + $0x8] sm:$0xff] %vm829, %v849
    %852 = vst.msk [vmem:[%s6 + $0x10] sm:$0xff] %vm829, %v828
    // Predicated region
    $region34: #{fc_q_forward.1} parent=1 // pred_check
      _
    $region35: #{fc_q_forward.1} parent=1 // pred_check_branch
      %854 = sbr.rel (0) target = $region37
    $region36: #{fc_q_forward.1} parent=1 // pred_region
      _
    $region37: #{fc_q_forward.1} parent=1 // pred_fallthru
      _
    // Predicated region
    $region38: #{fc_q_forward.1} parent=1 // pred_check
      _
    $region39: #{fc_q_forward.1} parent=1 // pred_check_branch
      %856 = sbr.rel (0) target = $region41
    $region40: #{fc_q_forward.1} parent=1 // pred_region
      _
    $region41: #{fc_q_forward.1} parent=1 // pred_fallthru
      _
    %857 = vsyncpa [#allocation3], 1
    %858 = vsyncpa [#allocation5], 1

</llo_original>
